<compile_context>
chip_gen: v5e
topology: v5e:2x2
jax: 0.10.0
libtpu: 0.0.40
codegen_flags: <defaults>
</compile_context>

<pallas_src>
import jax
import jax.numpy as jnp
from jax.experimental import pallas as pl
from jax.experimental.pallas import tpu as pltpu

HIDDEN = 32
STRIP = 8                      # sublane strip height (one f32 vreg row-group)
_XLA_FALLBACK_MAX = 8192       # below this batch size, fused XLA is cheaper
_MAX_TILE_BYTES = 512 * 1024   # per-input-block VMEM budget (review: 0.5-1 MiB)
_MAX_ROWS_PER_TILE = 256       # also bounds the unrolled-strip trace size


def _mlp_vpu_kernel(w1_ref, b1_ref, w2_ref, b2_ref, x_ref, o_ref):
    """o = sum_k relu(x*w1[k] + b1[k]) * w2[k] + b2, strip-mined over sublanes.

    Params are scalars in SMEM; x/o blocks are lane-dense f32 tiles in VMEM.
    Each 8-row strip keeps x / acc / h in ~a dozen vregs, so the unrolled
    32-step FMA chain is register-resident (no VMEM spills, no extra vst).
    """
    rows_per_tile = x_ref.shape[0]
    b2 = b2_ref[0]
    for s in range(rows_per_tile // STRIP):          # static, fully unrolled
        sl = pl.ds(s * STRIP, STRIP)                 # static strip slice
        xs = x_ref[sl, :]                            # (8, lanes) strip
        acc = jnp.zeros_like(xs)
        for k in range(HIDDEN):                      # 32-step VPU FMA chain
            h = jnp.maximum(xs * w1_ref[k] + b1_ref[k], 0.0)
            acc = acc + h * w2_ref[k]
        o_ref[sl, :] = (acc + b2).astype(o_ref.dtype)


def _choose_layout(n):
    """Pick (lanes, rows, rows_per_tile) for the flattened (N, 1) batch."""
    # Largest lane width that divides N avoids the pad and the [:n] slice.
    lanes = 128
    for cand in (512, 256, 128):
        if n % cand == 0:
            lanes = cand
            break
    rows = max(pl.cdiv(n, lanes), STRIP)             # at least 8 sublanes
    cap = min(_MAX_ROWS_PER_TILE,
              max(STRIP, (_MAX_TILE_BYTES // (4 * lanes)) // STRIP * STRIP))
    # Aim for >= 4 grid steps at mid-size N (v7x: both TensorCores busy and
    # DMA/compute overlap), without dropping below one 8-row strip per step.
    quarter = (rows // 4) // STRIP * STRIP
    rows_per_tile = min(cap, max(STRIP, quarter))
    return lanes, rows, rows_per_tile


def regression_model_forward(x, w1, b1, w2, b2, *, force_kernel=False):
    """Forward pass matching the PyTorch RegressionModel.

    x : (N, 1)  float32
    w1: (1, 32) float32 (hid1.weight^T)   b1: (1, 32) or (32,)
    w2: (32, 1) float32 (hid2.weight^T)   b2: (1, 1)  or (1,)
    returns (N, 1) float32
    """
    n = x.shape[0]
    w1f = w1.reshape(-1).astype(jnp.float32)         # (32,)
    b1f = b1.reshape(-1).astype(jnp.float32)         # (32,)
    w2f = w2.reshape(-1).astype(jnp.float32)         # (32,)
    b2f = b2.reshape(-1).astype(jnp.float32)         # (1,)

    if n <= _XLA_FALLBACK_MAX and not force_kernel:
        # Launch + layout overhead of a custom call dwarfs the math at small N.
        h = jnp.maximum(x.astype(jnp.float32) * w1f[None, :] + b1f[None, :], 0.0)
        return (h @ w2f[:, None] + b2f).astype(jnp.float32)

    lanes, rows, rows_per_tile = _choose_layout(n)
    padded = rows * lanes

    x_flat = x.reshape(-1).astype(jnp.float32)
    if padded != n:                                  # only when N % lanes != 0
        x_flat = jnp.pad(x_flat, (0, padded - n))
    x2d = x_flat.reshape(rows, lanes)                # lane-dense, free reshape

    num_tiles = pl.cdiv(rows, rows_per_tile)         # ragged last block: masked
    cost = pl.CostEstimate(
        flops=5 * HIDDEN * padded,                   # mul+add+max+mul+add per k
        transcendentals=0,
        bytes_accessed=2 * 4 * padded + 4 * (3 * HIDDEN + 1),
    )

    out2d = pl.pallas_call(
        _mlp_vpu_kernel,
        out_shape=jax.ShapeDtypeStruct((rows, lanes), jnp.float32),
        grid=(num_tiles,),
        in_specs=[
            pl.BlockSpec(memory_space=pltpu.MemorySpace.SMEM),   # w1 (32,)
            pl.BlockSpec(memory_space=pltpu.MemorySpace.SMEM),   # b1 (32,)
            pl.BlockSpec(memory_space=pltpu.MemorySpace.SMEM),   # w2 (32,)
            pl.BlockSpec(memory_space=pltpu.MemorySpace.SMEM),   # b2 (1,)
            pl.BlockSpec((rows_per_tile, lanes), lambda i: (i, 0)),
        ],
        out_specs=pl.BlockSpec((rows_per_tile, lanes), lambda i: (i, 0)),
        compiler_params=pltpu.CompilerParams(
            dimension_semantics=("parallel",)),
        cost_estimate=cost,
    )(w1f, b1f, w2f, b2f, x2d)

    out_flat = out2d.reshape(-1)
    if padded != n:
        out_flat = out_flat[:n]                      # only when padding existed
    return out_flat.reshape(n, 1)


def init_params(key):
    """Deterministic parameter init matching the PyTorch module's shapes."""
    k1, k2, k3, k4 = jax.random.split(key, 4)
    w1 = jax.random.uniform(k1, (1, 32), jnp.float32, -1.0, 1.0)          # fan_in=1
    b1 = jax.random.uniform(k2, (1, 32), jnp.float32, -1.0, 1.0)
    bound2 = 1.0 / jnp.sqrt(32.0)
    w2 = jax.random.uniform(k3, (32, 1), jnp.float32, -bound2, bound2)    # fan_in=32
    b2 = jax.random.uniform(k4, (1, 1), jnp.float32, -bound2, bound2)
    return w1, b1, w2, b2


def reference_forward(x, w1, b1, w2, b2):
    h = jnp.maximum(x @ w1 + b1, 0.0)
    return h @ w2 + b2


if __name__ == "__main__":
    key = jax.random.PRNGKey(0)
    kx, kp = jax.random.split(key)
    w1, b1, w2, b2 = init_params(kp)

    def check(n, force):
        xn = jax.random.normal(kx, (n, 1), jnp.float32)
        out = jax.block_until_ready(
            regression_model_forward(xn, w1, b1, w2, b2, force_kernel=force))
        ref = reference_forward(xn, w1, b1, w2, b2)
        assert out.shape == (n, 1), f"bad shape at n={n}"
        assert jnp.allclose(out, ref, atol=1e-5, rtol=1e-5), f"mismatch at n={n}"

    check(8, True)        # kernel: padded single tile (rows=8, lanes=128)
    check(8, False)       # XLA fallback path
    check(3000, True)     # kernel: padded, lanes=128, rows=24 -> 3 grid steps
    check(4096, True)     # kernel: no-pad fast path, lanes=512, single tile
    check(9216, False)    # default kernel path (>8192): no pad, lanes=512,
                          # rows=18 -> 3 grid steps with masked ragged last block

    print("KERNEL_OK")
</pallas_src>

<mosaic_0001>
module attributes {stable_mosaic.version = 11 : i64} {
  func.func @_mlp_vpu_kernel(%arg0: i32, %arg1: memref<32xf32, #tpu.memory_space<smem>>, %arg2: memref<32xf32, #tpu.memory_space<smem>>, %arg3: memref<32xf32, #tpu.memory_space<smem>>, %arg4: memref<1xf32, #tpu.memory_space<smem>>, %arg5: memref<8x128xf32, #tpu.memory_space<vmem>>, %arg6: memref<8x128xf32, #tpu.memory_space<vmem>>) attributes {dimension_semantics = [#tpu.dimension_semantics<parallel>], iteration_bounds = array<i64: 1>, scalar_prefetch = 0 : i64, scratch_operands = 0 : i64, tpu.core_type = #tpu.core_type<tc>, window_params = [{transform_indices = @transform_0, window_bounds = array<i64: 32>}, {transform_indices = @transform_1, window_bounds = array<i64: 32>}, {transform_indices = @transform_2, window_bounds = array<i64: 32>}, {transform_indices = @transform_3, window_bounds = array<i64: 1>}, {transform_indices = @transform_4, window_bounds = array<i64: 8, 128>}, {transform_indices = @transform_5, window_bounds = array<i64: 8, 128>}]} {
    %c0 = arith.constant 0 : index
    %0 = memref.load %arg4[%c0] : memref<1xf32, #tpu.memory_space<smem>>
    %c0_0 = arith.constant 0 : index
    %c0_1 = arith.constant 0 : index
    %1 = vector.load %arg5[%c0_0, %c0_1] : memref<8x128xf32, #tpu.memory_space<vmem>>, vector<8x128xf32>
    %cst = arith.constant 0.000000e+00 : f32
    %2 = vector.broadcast %cst : f32 to vector<8x128xf32>
    %c0_2 = arith.constant 0 : index
    %3 = memref.load %arg1[%c0_2] : memref<32xf32, #tpu.memory_space<smem>>
    %4 = vector.broadcast %3 : f32 to vector<8x128xf32>
    %5 = arith.mulf %1, %4 : vector<8x128xf32>
    %c0_3 = arith.constant 0 : index
    %6 = memref.load %arg2[%c0_3] : memref<32xf32, #tpu.memory_space<smem>>
    %7 = vector.broadcast %6 : f32 to vector<8x128xf32>
    %8 = arith.addf %5, %7 : vector<8x128xf32>
    %cst_4 = arith.constant 0.000000e+00 : f32
    %9 = vector.broadcast %cst_4 : f32 to vector<8x128xf32>
    %10 = arith.maximumf %8, %9 : vector<8x128xf32>
    %c0_5 = arith.constant 0 : index
    %11 = memref.load %arg3[%c0_5] : memref<32xf32, #tpu.memory_space<smem>>
    %12 = vector.broadcast %11 : f32 to vector<8x128xf32>
    %13 = arith.mulf %10, %12 : vector<8x128xf32>
    %14 = arith.addf %2, %13 : vector<8x128xf32>
    %c1 = arith.constant 1 : index
    %15 = memref.load %arg1[%c1] : memref<32xf32, #tpu.memory_space<smem>>
    %16 = vector.broadcast %15 : f32 to vector<8x128xf32>
    %17 = arith.mulf %1, %16 : vector<8x128xf32>
    %c1_6 = arith.constant 1 : index
    %18 = memref.load %arg2[%c1_6] : memref<32xf32, #tpu.memory_space<smem>>
    %19 = vector.broadcast %18 : f32 to vector<8x128xf32>
    %20 = arith.addf %17, %19 : vector<8x128xf32>
    %cst_7 = arith.constant 0.000000e+00 : f32
    %21 = vector.broadcast %cst_7 : f32 to vector<8x128xf32>
    %22 = arith.maximumf %20, %21 : vector<8x128xf32>
    %c1_8 = arith.constant 1 : index
    %23 = memref.load %arg3[%c1_8] : memref<32xf32, #tpu.memory_space<smem>>
    %24 = vector.broadcast %23 : f32 to vector<8x128xf32>
    %25 = arith.mulf %22, %24 : vector<8x128xf32>
    %26 = arith.addf %14, %25 : vector<8x128xf32>
    %c2 = arith.constant 2 : index
    %27 = memref.load %arg1[%c2] : memref<32xf32, #tpu.memory_space<smem>>
    %28 = vector.broadcast %27 : f32 to vector<8x128xf32>
    %29 = arith.mulf %1, %28 : vector<8x128xf32>
    %c2_9 = arith.constant 2 : index
    %30 = memref.load %arg2[%c2_9] : memref<32xf32, #tpu.memory_space<smem>>
    %31 = vector.broadcast %30 : f32 to vector<8x128xf32>
    %32 = arith.addf %29, %31 : vector<8x128xf32>
    %cst_10 = arith.constant 0.000000e+00 : f32
    %33 = vector.broadcast %cst_10 : f32 to vector<8x128xf32>
    %34 = arith.maximumf %32, %33 : vector<8x128xf32>
    %c2_11 = arith.constant 2 : index
    %35 = memref.load %arg3[%c2_11] : memref<32xf32, #tpu.memory_space<smem>>
    %36 = vector.broadcast %35 : f32 to vector<8x128xf32>
    %37 = arith.mulf %34, %36 : vector<8x128xf32>
    %38 = arith.addf %26, %37 : vector<8x128xf32>
    %c3 = arith.constant 3 : index
    %39 = memref.load %arg1[%c3] : memref<32xf32, #tpu.memory_space<smem>>
    %40 = vector.broadcast %39 : f32 to vector<8x128xf32>
    %41 = arith.mulf %1, %40 : vector<8x128xf32>
    %c3_12 = arith.constant 3 : index
    %42 = memref.load %arg2[%c3_12] : memref<32xf32, #tpu.memory_space<smem>>
    %43 = vector.broadcast %42 : f32 to vector<8x128xf32>
    %44 = arith.addf %41, %43 : vector<8x128xf32>
    %cst_13 = arith.constant 0.000000e+00 : f32
    %45 = vector.broadcast %cst_13 : f32 to vector<8x128xf32>
    %46 = arith.maximumf %44, %45 : vector<8x128xf32>
    %c3_14 = arith.constant 3 : index
    %47 = memref.load %arg3[%c3_14] : memref<32xf32, #tpu.memory_space<smem>>
    %48 = vector.broadcast %47 : f32 to vector<8x128xf32>
    %49 = arith.mulf %46, %48 : vector<8x128xf32>
    %50 = arith.addf %38, %49 : vector<8x128xf32>
    %c4 = arith.constant 4 : index
    %51 = memref.load %arg1[%c4] : memref<32xf32, #tpu.memory_space<smem>>
    %52 = vector.broadcast %51 : f32 to vector<8x128xf32>
    %53 = arith.mulf %1, %52 : vector<8x128xf32>
    %c4_15 = arith.constant 4 : index
    %54 = memref.load %arg2[%c4_15] : memref<32xf32, #tpu.memory_space<smem>>
    %55 = vector.broadcast %54 : f32 to vector<8x128xf32>
    %56 = arith.addf %53, %55 : vector<8x128xf32>
    %cst_16 = arith.constant 0.000000e+00 : f32
    %57 = vector.broadcast %cst_16 : f32 to vector<8x128xf32>
    %58 = arith.maximumf %56, %57 : vector<8x128xf32>
    %c4_17 = arith.constant 4 : index
    %59 = memref.load %arg3[%c4_17] : memref<32xf32, #tpu.memory_space<smem>>
    %60 = vector.broadcast %59 : f32 to vector<8x128xf32>
    %61 = arith.mulf %58, %60 : vector<8x128xf32>
    %62 = arith.addf %50, %61 : vector<8x128xf32>
    %c5 = arith.constant 5 : index
    %63 = memref.load %arg1[%c5] : memref<32xf32, #tpu.memory_space<smem>>
    %64 = vector.broadcast %63 : f32 to vector<8x128xf32>
    %65 = arith.mulf %1, %64 : vector<8x128xf32>
    %c5_18 = arith.constant 5 : index
    %66 = memref.load %arg2[%c5_18] : memref<32xf32, #tpu.memory_space<smem>>
    %67 = vector.broadcast %66 : f32 to vector<8x128xf32>
    %68 = arith.addf %65, %67 : vector<8x128xf32>
    %cst_19 = arith.constant 0.000000e+00 : f32
    %69 = vector.broadcast %cst_19 : f32 to vector<8x128xf32>
    %70 = arith.maximumf %68, %69 : vector<8x128xf32>
    %c5_20 = arith.constant 5 : index
    %71 = memref.load %arg3[%c5_20] : memref<32xf32, #tpu.memory_space<smem>>
    %72 = vector.broadcast %71 : f32 to vector<8x128xf32>
    %73 = arith.mulf %70, %72 : vector<8x128xf32>
    %74 = arith.addf %62, %73 : vector<8x128xf32>
    %c6 = arith.constant 6 : index
    %75 = memref.load %arg1[%c6] : memref<32xf32, #tpu.memory_space<smem>>
    %76 = vector.broadcast %75 : f32 to vector<8x128xf32>
    %77 = arith.mulf %1, %76 : vector<8x128xf32>
    %c6_21 = arith.constant 6 : index
    %78 = memref.load %arg2[%c6_21] : memref<32xf32, #tpu.memory_space<smem>>
    %79 = vector.broadcast %78 : f32 to vector<8x128xf32>
    %80 = arith.addf %77, %79 : vector<8x128xf32>
    %cst_22 = arith.constant 0.000000e+00 : f32
    %81 = vector.broadcast %cst_22 : f32 to vector<8x128xf32>
    %82 = arith.maximumf %80, %81 : vector<8x128xf32>
    %c6_23 = arith.constant 6 : index
    %83 = memref.load %arg3[%c6_23] : memref<32xf32, #tpu.memory_space<smem>>
    %84 = vector.broadcast %83 : f32 to vector<8x128xf32>
    %85 = arith.mulf %82, %84 : vector<8x128xf32>
    %86 = arith.addf %74, %85 : vector<8x128xf32>
    %c7 = arith.constant 7 : index
    %87 = memref.load %arg1[%c7] : memref<32xf32, #tpu.memory_space<smem>>
    %88 = vector.broadcast %87 : f32 to vector<8x128xf32>
    %89 = arith.mulf %1, %88 : vector<8x128xf32>
    %c7_24 = arith.constant 7 : index
    %90 = memref.load %arg2[%c7_24] : memref<32xf32, #tpu.memory_space<smem>>
    %91 = vector.broadcast %90 : f32 to vector<8x128xf32>
    %92 = arith.addf %89, %91 : vector<8x128xf32>
    %cst_25 = arith.constant 0.000000e+00 : f32
    %93 = vector.broadcast %cst_25 : f32 to vector<8x128xf32>
    %94 = arith.maximumf %92, %93 : vector<8x128xf32>
    %c7_26 = arith.constant 7 : index
    %95 = memref.load %arg3[%c7_26] : memref<32xf32, #tpu.memory_space<smem>>
    %96 = vector.broadcast %95 : f32 to vector<8x128xf32>
    %97 = arith.mulf %94, %96 : vector<8x128xf32>
    %98 = arith.addf %86, %97 : vector<8x128xf32>
    %c8 = arith.constant 8 : index
    %99 = memref.load %arg1[%c8] : memref<32xf32, #tpu.memory_space<smem>>
    %100 = vector.broadcast %99 : f32 to vector<8x128xf32>
    %101 = arith.mulf %1, %100 : vector<8x128xf32>
    %c8_27 = arith.constant 8 : index
    %102 = memref.load %arg2[%c8_27] : memref<32xf32, #tpu.memory_space<smem>>
    %103 = vector.broadcast %102 : f32 to vector<8x128xf32>
    %104 = arith.addf %101, %103 : vector<8x128xf32>
    %cst_28 = arith.constant 0.000000e+00 : f32
    %105 = vector.broadcast %cst_28 : f32 to vector<8x128xf32>
    %106 = arith.maximumf %104, %105 : vector<8x128xf32>
    %c8_29 = arith.constant 8 : index
    %107 = memref.load %arg3[%c8_29] : memref<32xf32, #tpu.memory_space<smem>>
    %108 = vector.broadcast %107 : f32 to vector<8x128xf32>
    %109 = arith.mulf %106, %108 : vector<8x128xf32>
    %110 = arith.addf %98, %109 : vector<8x128xf32>
    %c9 = arith.constant 9 : index
    %111 = memref.load %arg1[%c9] : memref<32xf32, #tpu.memory_space<smem>>
    %112 = vector.broadcast %111 : f32 to vector<8x128xf32>
    %113 = arith.mulf %1, %112 : vector<8x128xf32>
    %c9_30 = arith.constant 9 : index
    %114 = memref.load %arg2[%c9_30] : memref<32xf32, #tpu.memory_space<smem>>
    %115 = vector.broadcast %114 : f32 to vector<8x128xf32>
    %116 = arith.addf %113, %115 : vector<8x128xf32>
    %cst_31 = arith.constant 0.000000e+00 : f32
    %117 = vector.broadcast %cst_31 : f32 to vector<8x128xf32>
    %118 = arith.maximumf %116, %117 : vector<8x128xf32>
    %c9_32 = arith.constant 9 : index
    %119 = memref.load %arg3[%c9_32] : memref<32xf32, #tpu.memory_space<smem>>
    %120 = vector.broadcast %119 : f32 to vector<8x128xf32>
    %121 = arith.mulf %118, %120 : vector<8x128xf32>
    %122 = arith.addf %110, %121 : vector<8x128xf32>
    %c10 = arith.constant 10 : index
    %123 = memref.load %arg1[%c10] : memref<32xf32, #tpu.memory_space<smem>>
    %124 = vector.broadcast %123 : f32 to vector<8x128xf32>
    %125 = arith.mulf %1, %124 : vector<8x128xf32>
    %c10_33 = arith.constant 10 : index
    %126 = memref.load %arg2[%c10_33] : memref<32xf32, #tpu.memory_space<smem>>
    %127 = vector.broadcast %126 : f32 to vector<8x128xf32>
    %128 = arith.addf %125, %127 : vector<8x128xf32>
    %cst_34 = arith.constant 0.000000e+00 : f32
    %129 = vector.broadcast %cst_34 : f32 to vector<8x128xf32>
    %130 = arith.maximumf %128, %129 : vector<8x128xf32>
    %c10_35 = arith.constant 10 : index
    %131 = memref.load %arg3[%c10_35] : memref<32xf32, #tpu.memory_space<smem>>
    %132 = vector.broadcast %131 : f32 to vector<8x128xf32>
    %133 = arith.mulf %130, %132 : vector<8x128xf32>
    %134 = arith.addf %122, %133 : vector<8x128xf32>
    %c11 = arith.constant 11 : index
    %135 = memref.load %arg1[%c11] : memref<32xf32, #tpu.memory_space<smem>>
    %136 = vector.broadcast %135 : f32 to vector<8x128xf32>
    %137 = arith.mulf %1, %136 : vector<8x128xf32>
    %c11_36 = arith.constant 11 : index
    %138 = memref.load %arg2[%c11_36] : memref<32xf32, #tpu.memory_space<smem>>
    %139 = vector.broadcast %138 : f32 to vector<8x128xf32>
    %140 = arith.addf %137, %139 : vector<8x128xf32>
    %cst_37 = arith.constant 0.000000e+00 : f32
    %141 = vector.broadcast %cst_37 : f32 to vector<8x128xf32>
    %142 = arith.maximumf %140, %141 : vector<8x128xf32>
    %c11_38 = arith.constant 11 : index
    %143 = memref.load %arg3[%c11_38] : memref<32xf32, #tpu.memory_space<smem>>
    %144 = vector.broadcast %143 : f32 to vector<8x128xf32>
    %145 = arith.mulf %142, %144 : vector<8x128xf32>
    %146 = arith.addf %134, %145 : vector<8x128xf32>
    %c12 = arith.constant 12 : index
    %147 = memref.load %arg1[%c12] : memref<32xf32, #tpu.memory_space<smem>>
    %148 = vector.broadcast %147 : f32 to vector<8x128xf32>
    %149 = arith.mulf %1, %148 : vector<8x128xf32>
    %c12_39 = arith.constant 12 : index
    %150 = memref.load %arg2[%c12_39] : memref<32xf32, #tpu.memory_space<smem>>
    %151 = vector.broadcast %150 : f32 to vector<8x128xf32>
    %152 = arith.addf %149, %151 : vector<8x128xf32>
    %cst_40 = arith.constant 0.000000e+00 : f32
    %153 = vector.broadcast %cst_40 : f32 to vector<8x128xf32>
    %154 = arith.maximumf %152, %153 : vector<8x128xf32>
    %c12_41 = arith.constant 12 : index
    %155 = memref.load %arg3[%c12_41] : memref<32xf32, #tpu.memory_space<smem>>
    %156 = vector.broadcast %155 : f32 to vector<8x128xf32>
    %157 = arith.mulf %154, %156 : vector<8x128xf32>
    %158 = arith.addf %146, %157 : vector<8x128xf32>
    %c13 = arith.constant 13 : index
    %159 = memref.load %arg1[%c13] : memref<32xf32, #tpu.memory_space<smem>>
    %160 = vector.broadcast %159 : f32 to vector<8x128xf32>
    %161 = arith.mulf %1, %160 : vector<8x128xf32>
    %c13_42 = arith.constant 13 : index
    %162 = memref.load %arg2[%c13_42] : memref<32xf32, #tpu.memory_space<smem>>
    %163 = vector.broadcast %162 : f32 to vector<8x128xf32>
    %164 = arith.addf %161, %163 : vector<8x128xf32>
    %cst_43 = arith.constant 0.000000e+00 : f32
    %165 = vector.broadcast %cst_43 : f32 to vector<8x128xf32>
    %166 = arith.maximumf %164, %165 : vector<8x128xf32>
    %c13_44 = arith.constant 13 : index
    %167 = memref.load %arg3[%c13_44] : memref<32xf32, #tpu.memory_space<smem>>
    %168 = vector.broadcast %167 : f32 to vector<8x128xf32>
    %169 = arith.mulf %166, %168 : vector<8x128xf32>
    %170 = arith.addf %158, %169 : vector<8x128xf32>
    %c14 = arith.constant 14 : index
    %171 = memref.load %arg1[%c14] : memref<32xf32, #tpu.memory_space<smem>>
    %172 = vector.broadcast %171 : f32 to vector<8x128xf32>
    %173 = arith.mulf %1, %172 : vector<8x128xf32>
    %c14_45 = arith.constant 14 : index
    %174 = memref.load %arg2[%c14_45] : memref<32xf32, #tpu.memory_space<smem>>
    %175 = vector.broadcast %174 : f32 to vector<8x128xf32>
    %176 = arith.addf %173, %175 : vector<8x128xf32>
    %cst_46 = arith.constant 0.000000e+00 : f32
    %177 = vector.broadcast %cst_46 : f32 to vector<8x128xf32>
    %178 = arith.maximumf %176, %177 : vector<8x128xf32>
    %c14_47 = arith.constant 14 : index
    %179 = memref.load %arg3[%c14_47] : memref<32xf32, #tpu.memory_space<smem>>
    %180 = vector.broadcast %179 : f32 to vector<8x128xf32>
    %181 = arith.mulf %178, %180 : vector<8x128xf32>
    %182 = arith.addf %170, %181 : vector<8x128xf32>
    %c15 = arith.constant 15 : index
    %183 = memref.load %arg1[%c15] : memref<32xf32, #tpu.memory_space<smem>>
    %184 = vector.broadcast %183 : f32 to vector<8x128xf32>
    %185 = arith.mulf %1, %184 : vector<8x128xf32>
    %c15_48 = arith.constant 15 : index
    %186 = memref.load %arg2[%c15_48] : memref<32xf32, #tpu.memory_space<smem>>
    %187 = vector.broadcast %186 : f32 to vector<8x128xf32>
    %188 = arith.addf %185, %187 : vector<8x128xf32>
    %cst_49 = arith.constant 0.000000e+00 : f32
    %189 = vector.broadcast %cst_49 : f32 to vector<8x128xf32>
    %190 = arith.maximumf %188, %189 : vector<8x128xf32>
    %c15_50 = arith.constant 15 : index
    %191 = memref.load %arg3[%c15_50] : memref<32xf32, #tpu.memory_space<smem>>
    %192 = vector.broadcast %191 : f32 to vector<8x128xf32>
    %193 = arith.mulf %190, %192 : vector<8x128xf32>
    %194 = arith.addf %182, %193 : vector<8x128xf32>
    %c16 = arith.constant 16 : index
    %195 = memref.load %arg1[%c16] : memref<32xf32, #tpu.memory_space<smem>>
    %196 = vector.broadcast %195 : f32 to vector<8x128xf32>
    %197 = arith.mulf %1, %196 : vector<8x128xf32>
    %c16_51 = arith.constant 16 : index
    %198 = memref.load %arg2[%c16_51] : memref<32xf32, #tpu.memory_space<smem>>
    %199 = vector.broadcast %198 : f32 to vector<8x128xf32>
    %200 = arith.addf %197, %199 : vector<8x128xf32>
    %cst_52 = arith.constant 0.000000e+00 : f32
    %201 = vector.broadcast %cst_52 : f32 to vector<8x128xf32>
    %202 = arith.maximumf %200, %201 : vector<8x128xf32>
    %c16_53 = arith.constant 16 : index
    %203 = memref.load %arg3[%c16_53] : memref<32xf32, #tpu.memory_space<smem>>
    %204 = vector.broadcast %203 : f32 to vector<8x128xf32>
    %205 = arith.mulf %202, %204 : vector<8x128xf32>
    %206 = arith.addf %194, %205 : vector<8x128xf32>
    %c17 = arith.constant 17 : index
    %207 = memref.load %arg1[%c17] : memref<32xf32, #tpu.memory_space<smem>>
    %208 = vector.broadcast %207 : f32 to vector<8x128xf32>
    %209 = arith.mulf %1, %208 : vector<8x128xf32>
    %c17_54 = arith.constant 17 : index
    %210 = memref.load %arg2[%c17_54] : memref<32xf32, #tpu.memory_space<smem>>
    %211 = vector.broadcast %210 : f32 to vector<8x128xf32>
    %212 = arith.addf %209, %211 : vector<8x128xf32>
    %cst_55 = arith.constant 0.000000e+00 : f32
    %213 = vector.broadcast %cst_55 : f32 to vector<8x128xf32>
    %214 = arith.maximumf %212, %213 : vector<8x128xf32>
    %c17_56 = arith.constant 17 : index
    %215 = memref.load %arg3[%c17_56] : memref<32xf32, #tpu.memory_space<smem>>
    %216 = vector.broadcast %215 : f32 to vector<8x128xf32>
    %217 = arith.mulf %214, %216 : vector<8x128xf32>
    %218 = arith.addf %206, %217 : vector<8x128xf32>
    %c18 = arith.constant 18 : index
    %219 = memref.load %arg1[%c18] : memref<32xf32, #tpu.memory_space<smem>>
    %220 = vector.broadcast %219 : f32 to vector<8x128xf32>
    %221 = arith.mulf %1, %220 : vector<8x128xf32>
    %c18_57 = arith.constant 18 : index
    %222 = memref.load %arg2[%c18_57] : memref<32xf32, #tpu.memory_space<smem>>
    %223 = vector.broadcast %222 : f32 to vector<8x128xf32>
    %224 = arith.addf %221, %223 : vector<8x128xf32>
    %cst_58 = arith.constant 0.000000e+00 : f32
    %225 = vector.broadcast %cst_58 : f32 to vector<8x128xf32>
    %226 = arith.maximumf %224, %225 : vector<8x128xf32>
    %c18_59 = arith.constant 18 : index
    %227 = memref.load %arg3[%c18_59] : memref<32xf32, #tpu.memory_space<smem>>
    %228 = vector.broadcast %227 : f32 to vector<8x128xf32>
    %229 = arith.mulf %226, %228 : vector<8x128xf32>
    %230 = arith.addf %218, %229 : vector<8x128xf32>
    %c19 = arith.constant 19 : index
    %231 = memref.load %arg1[%c19] : memref<32xf32, #tpu.memory_space<smem>>
    %232 = vector.broadcast %231 : f32 to vector<8x128xf32>
    %233 = arith.mulf %1, %232 : vector<8x128xf32>
    %c19_60 = arith.constant 19 : index
    %234 = memref.load %arg2[%c19_60] : memref<32xf32, #tpu.memory_space<smem>>
    %235 = vector.broadcast %234 : f32 to vector<8x128xf32>
    %236 = arith.addf %233, %235 : vector<8x128xf32>
    %cst_61 = arith.constant 0.000000e+00 : f32
    %237 = vector.broadcast %cst_61 : f32 to vector<8x128xf32>
    %238 = arith.maximumf %236, %237 : vector<8x128xf32>
    %c19_62 = arith.constant 19 : index
    %239 = memref.load %arg3[%c19_62] : memref<32xf32, #tpu.memory_space<smem>>
    %240 = vector.broadcast %239 : f32 to vector<8x128xf32>
    %241 = arith.mulf %238, %240 : vector<8x128xf32>
    %242 = arith.addf %230, %241 : vector<8x128xf32>
    %c20 = arith.constant 20 : index
    %243 = memref.load %arg1[%c20] : memref<32xf32, #tpu.memory_space<smem>>
    %244 = vector.broadcast %243 : f32 to vector<8x128xf32>
    %245 = arith.mulf %1, %244 : vector<8x128xf32>
    %c20_63 = arith.constant 20 : index
    %246 = memref.load %arg2[%c20_63] : memref<32xf32, #tpu.memory_space<smem>>
    %247 = vector.broadcast %246 : f32 to vector<8x128xf32>
    %248 = arith.addf %245, %247 : vector<8x128xf32>
    %cst_64 = arith.constant 0.000000e+00 : f32
    %249 = vector.broadcast %cst_64 : f32 to vector<8x128xf32>
    %250 = arith.maximumf %248, %249 : vector<8x128xf32>
    %c20_65 = arith.constant 20 : index
    %251 = memref.load %arg3[%c20_65] : memref<32xf32, #tpu.memory_space<smem>>
    %252 = vector.broadcast %251 : f32 to vector<8x128xf32>
    %253 = arith.mulf %250, %252 : vector<8x128xf32>
    %254 = arith.addf %242, %253 : vector<8x128xf32>
    %c21 = arith.constant 21 : index
    %255 = memref.load %arg1[%c21] : memref<32xf32, #tpu.memory_space<smem>>
    %256 = vector.broadcast %255 : f32 to vector<8x128xf32>
    %257 = arith.mulf %1, %256 : vector<8x128xf32>
    %c21_66 = arith.constant 21 : index
    %258 = memref.load %arg2[%c21_66] : memref<32xf32, #tpu.memory_space<smem>>
    %259 = vector.broadcast %258 : f32 to vector<8x128xf32>
    %260 = arith.addf %257, %259 : vector<8x128xf32>
    %cst_67 = arith.constant 0.000000e+00 : f32
    %261 = vector.broadcast %cst_67 : f32 to vector<8x128xf32>
    %262 = arith.maximumf %260, %261 : vector<8x128xf32>
    %c21_68 = arith.constant 21 : index
    %263 = memref.load %arg3[%c21_68] : memref<32xf32, #tpu.memory_space<smem>>
    %264 = vector.broadcast %263 : f32 to vector<8x128xf32>
    %265 = arith.mulf %262, %264 : vector<8x128xf32>
    %266 = arith.addf %254, %265 : vector<8x128xf32>
    %c22 = arith.constant 22 : index
    %267 = memref.load %arg1[%c22] : memref<32xf32, #tpu.memory_space<smem>>
    %268 = vector.broadcast %267 : f32 to vector<8x128xf32>
    %269 = arith.mulf %1, %268 : vector<8x128xf32>
    %c22_69 = arith.constant 22 : index
    %270 = memref.load %arg2[%c22_69] : memref<32xf32, #tpu.memory_space<smem>>
    %271 = vector.broadcast %270 : f32 to vector<8x128xf32>
    %272 = arith.addf %269, %271 : vector<8x128xf32>
    %cst_70 = arith.constant 0.000000e+00 : f32
    %273 = vector.broadcast %cst_70 : f32 to vector<8x128xf32>
    %274 = arith.maximumf %272, %273 : vector<8x128xf32>
    %c22_71 = arith.constant 22 : index
    %275 = memref.load %arg3[%c22_71] : memref<32xf32, #tpu.memory_space<smem>>
    %276 = vector.broadcast %275 : f32 to vector<8x128xf32>
    %277 = arith.mulf %274, %276 : vector<8x128xf32>
    %278 = arith.addf %266, %277 : vector<8x128xf32>
    %c23 = arith.constant 23 : index
    %279 = memref.load %arg1[%c23] : memref<32xf32, #tpu.memory_space<smem>>
    %280 = vector.broadcast %279 : f32 to vector<8x128xf32>
    %281 = arith.mulf %1, %280 : vector<8x128xf32>
    %c23_72 = arith.constant 23 : index
    %282 = memref.load %arg2[%c23_72] : memref<32xf32, #tpu.memory_space<smem>>
    %283 = vector.broadcast %282 : f32 to vector<8x128xf32>
    %284 = arith.addf %281, %283 : vector<8x128xf32>
    %cst_73 = arith.constant 0.000000e+00 : f32
    %285 = vector.broadcast %cst_73 : f32 to vector<8x128xf32>
    %286 = arith.maximumf %284, %285 : vector<8x128xf32>
    %c23_74 = arith.constant 23 : index
    %287 = memref.load %arg3[%c23_74] : memref<32xf32, #tpu.memory_space<smem>>
    %288 = vector.broadcast %287 : f32 to vector<8x128xf32>
    %289 = arith.mulf %286, %288 : vector<8x128xf32>
    %290 = arith.addf %278, %289 : vector<8x128xf32>
    %c24 = arith.constant 24 : index
    %291 = memref.load %arg1[%c24] : memref<32xf32, #tpu.memory_space<smem>>
    %292 = vector.broadcast %291 : f32 to vector<8x128xf32>
    %293 = arith.mulf %1, %292 : vector<8x128xf32>
    %c24_75 = arith.constant 24 : index
    %294 = memref.load %arg2[%c24_75] : memref<32xf32, #tpu.memory_space<smem>>
    %295 = vector.broadcast %294 : f32 to vector<8x128xf32>
    %296 = arith.addf %293, %295 : vector<8x128xf32>
    %cst_76 = arith.constant 0.000000e+00 : f32
    %297 = vector.broadcast %cst_76 : f32 to vector<8x128xf32>
    %298 = arith.maximumf %296, %297 : vector<8x128xf32>
    %c24_77 = arith.constant 24 : index
    %299 = memref.load %arg3[%c24_77] : memref<32xf32, #tpu.memory_space<smem>>
    %300 = vector.broadcast %299 : f32 to vector<8x128xf32>
    %301 = arith.mulf %298, %300 : vector<8x128xf32>
    %302 = arith.addf %290, %301 : vector<8x128xf32>
    %c25 = arith.constant 25 : index
    %303 = memref.load %arg1[%c25] : memref<32xf32, #tpu.memory_space<smem>>
    %304 = vector.broadcast %303 : f32 to vector<8x128xf32>
    %305 = arith.mulf %1, %304 : vector<8x128xf32>
    %c25_78 = arith.constant 25 : index
    %306 = memref.load %arg2[%c25_78] : memref<32xf32, #tpu.memory_space<smem>>
    %307 = vector.broadcast %306 : f32 to vector<8x128xf32>
    %308 = arith.addf %305, %307 : vector<8x128xf32>
    %cst_79 = arith.constant 0.000000e+00 : f32
    %309 = vector.broadcast %cst_79 : f32 to vector<8x128xf32>
    %310 = arith.maximumf %308, %309 : vector<8x128xf32>
    %c25_80 = arith.constant 25 : index
    %311 = memref.load %arg3[%c25_80] : memref<32xf32, #tpu.memory_space<smem>>
    %312 = vector.broadcast %311 : f32 to vector<8x128xf32>
    %313 = arith.mulf %310, %312 : vector<8x128xf32>
    %314 = arith.addf %302, %313 : vector<8x128xf32>
    %c26 = arith.constant 26 : index
    %315 = memref.load %arg1[%c26] : memref<32xf32, #tpu.memory_space<smem>>
    %316 = vector.broadcast %315 : f32 to vector<8x128xf32>
    %317 = arith.mulf %1, %316 : vector<8x128xf32>
    %c26_81 = arith.constant 26 : index
    %318 = memref.load %arg2[%c26_81] : memref<32xf32, #tpu.memory_space<smem>>
    %319 = vector.broadcast %318 : f32 to vector<8x128xf32>
    %320 = arith.addf %317, %319 : vector<8x128xf32>
    %cst_82 = arith.constant 0.000000e+00 : f32
    %321 = vector.broadcast %cst_82 : f32 to vector<8x128xf32>
    %322 = arith.maximumf %320, %321 : vector<8x128xf32>
    %c26_83 = arith.constant 26 : index
    %323 = memref.load %arg3[%c26_83] : memref<32xf32, #tpu.memory_space<smem>>
    %324 = vector.broadcast %323 : f32 to vector<8x128xf32>
    %325 = arith.mulf %322, %324 : vector<8x128xf32>
    %326 = arith.addf %314, %325 : vector<8x128xf32>
    %c27 = arith.constant 27 : index
    %327 = memref.load %arg1[%c27] : memref<32xf32, #tpu.memory_space<smem>>
    %328 = vector.broadcast %327 : f32 to vector<8x128xf32>
    %329 = arith.mulf %1, %328 : vector<8x128xf32>
    %c27_84 = arith.constant 27 : index
    %330 = memref.load %arg2[%c27_84] : memref<32xf32, #tpu.memory_space<smem>>
    %331 = vector.broadcast %330 : f32 to vector<8x128xf32>
    %332 = arith.addf %329, %331 : vector<8x128xf32>
    %cst_85 = arith.constant 0.000000e+00 : f32
    %333 = vector.broadcast %cst_85 : f32 to vector<8x128xf32>
    %334 = arith.maximumf %332, %333 : vector<8x128xf32>
    %c27_86 = arith.constant 27 : index
    %335 = memref.load %arg3[%c27_86] : memref<32xf32, #tpu.memory_space<smem>>
    %336 = vector.broadcast %335 : f32 to vector<8x128xf32>
    %337 = arith.mulf %334, %336 : vector<8x128xf32>
    %338 = arith.addf %326, %337 : vector<8x128xf32>
    %c28 = arith.constant 28 : index
    %339 = memref.load %arg1[%c28] : memref<32xf32, #tpu.memory_space<smem>>
    %340 = vector.broadcast %339 : f32 to vector<8x128xf32>
    %341 = arith.mulf %1, %340 : vector<8x128xf32>
    %c28_87 = arith.constant 28 : index
    %342 = memref.load %arg2[%c28_87] : memref<32xf32, #tpu.memory_space<smem>>
    %343 = vector.broadcast %342 : f32 to vector<8x128xf32>
    %344 = arith.addf %341, %343 : vector<8x128xf32>
    %cst_88 = arith.constant 0.000000e+00 : f32
    %345 = vector.broadcast %cst_88 : f32 to vector<8x128xf32>
    %346 = arith.maximumf %344, %345 : vector<8x128xf32>
    %c28_89 = arith.constant 28 : index
    %347 = memref.load %arg3[%c28_89] : memref<32xf32, #tpu.memory_space<smem>>
    %348 = vector.broadcast %347 : f32 to vector<8x128xf32>
    %349 = arith.mulf %346, %348 : vector<8x128xf32>
    %350 = arith.addf %338, %349 : vector<8x128xf32>
    %c29 = arith.constant 29 : index
    %351 = memref.load %arg1[%c29] : memref<32xf32, #tpu.memory_space<smem>>
    %352 = vector.broadcast %351 : f32 to vector<8x128xf32>
    %353 = arith.mulf %1, %352 : vector<8x128xf32>
    %c29_90 = arith.constant 29 : index
    %354 = memref.load %arg2[%c29_90] : memref<32xf32, #tpu.memory_space<smem>>
    %355 = vector.broadcast %354 : f32 to vector<8x128xf32>
    %356 = arith.addf %353, %355 : vector<8x128xf32>
    %cst_91 = arith.constant 0.000000e+00 : f32
    %357 = vector.broadcast %cst_91 : f32 to vector<8x128xf32>
    %358 = arith.maximumf %356, %357 : vector<8x128xf32>
    %c29_92 = arith.constant 29 : index
    %359 = memref.load %arg3[%c29_92] : memref<32xf32, #tpu.memory_space<smem>>
    %360 = vector.broadcast %359 : f32 to vector<8x128xf32>
    %361 = arith.mulf %358, %360 : vector<8x128xf32>
    %362 = arith.addf %350, %361 : vector<8x128xf32>
    %c30 = arith.constant 30 : index
    %363 = memref.load %arg1[%c30] : memref<32xf32, #tpu.memory_space<smem>>
    %364 = vector.broadcast %363 : f32 to vector<8x128xf32>
    %365 = arith.mulf %1, %364 : vector<8x128xf32>
    %c30_93 = arith.constant 30 : index
    %366 = memref.load %arg2[%c30_93] : memref<32xf32, #tpu.memory_space<smem>>
    %367 = vector.broadcast %366 : f32 to vector<8x128xf32>
    %368 = arith.addf %365, %367 : vector<8x128xf32>
    %cst_94 = arith.constant 0.000000e+00 : f32
    %369 = vector.broadcast %cst_94 : f32 to vector<8x128xf32>
    %370 = arith.maximumf %368, %369 : vector<8x128xf32>
    %c30_95 = arith.constant 30 : index
    %371 = memref.load %arg3[%c30_95] : memref<32xf32, #tpu.memory_space<smem>>
    %372 = vector.broadcast %371 : f32 to vector<8x128xf32>
    %373 = arith.mulf %370, %372 : vector<8x128xf32>
    %374 = arith.addf %362, %373 : vector<8x128xf32>
    %c31 = arith.constant 31 : index
    %375 = memref.load %arg1[%c31] : memref<32xf32, #tpu.memory_space<smem>>
    %376 = vector.broadcast %375 : f32 to vector<8x128xf32>
    %377 = arith.mulf %1, %376 : vector<8x128xf32>
    %c31_96 = arith.constant 31 : index
    %378 = memref.load %arg2[%c31_96] : memref<32xf32, #tpu.memory_space<smem>>
    %379 = vector.broadcast %378 : f32 to vector<8x128xf32>
    %380 = arith.addf %377, %379 : vector<8x128xf32>
    %cst_97 = arith.constant 0.000000e+00 : f32
    %381 = vector.broadcast %cst_97 : f32 to vector<8x128xf32>
    %382 = arith.maximumf %380, %381 : vector<8x128xf32>
    %c31_98 = arith.constant 31 : index
    %383 = memref.load %arg3[%c31_98] : memref<32xf32, #tpu.memory_space<smem>>
    %384 = vector.broadcast %383 : f32 to vector<8x128xf32>
    %385 = arith.mulf %382, %384 : vector<8x128xf32>
    %386 = arith.addf %374, %385 : vector<8x128xf32>
    %387 = vector.broadcast %0 : f32 to vector<8x128xf32>
    %388 = arith.addf %386, %387 : vector<8x128xf32>
    %c0_99 = arith.constant 0 : index
    %c0_100 = arith.constant 0 : index
    %389 = vector.load %arg6[%c0_99, %c0_100] : memref<8x128xf32, #tpu.memory_space<vmem>>, vector<8x128xf32>
    tpu.vector_store %arg6[%c0_99, %c0_100], %388 {strides = array<i32>} : memref<8x128xf32, #tpu.memory_space<vmem>>, vector<8x128xf32>,
    return
  }
  func.func @transform_0(%arg0: i32) -> i32 {
    %c0_i32 = arith.constant 0 : i32
    %c0_i32_0 = arith.constant 0 : i32
    return %c0_i32 : i32
  }
  func.func @transform_1(%arg0: i32) -> i32 {
    %c0_i32 = arith.constant 0 : i32
    %c0_i32_0 = arith.constant 0 : i32
    return %c0_i32 : i32
  }
  func.func @transform_2(%arg0: i32) -> i32 {
    %c0_i32 = arith.constant 0 : i32
    %c0_i32_0 = arith.constant 0 : i32
    return %c0_i32 : i32
  }
  func.func @transform_3(%arg0: i32) -> i32 {
    %c0_i32 = arith.constant 0 : i32
    %c0_i32_0 = arith.constant 0 : i32
    return %c0_i32 : i32
  }
  func.func @transform_4(%arg0: i32) -> (i32, i32) {
    %c0_i32 = arith.constant 0 : i32
    %c0_i32_0 = arith.constant 0 : i32
    return %arg0, %c0_i32 : i32, i32
  }
  func.func @transform_5(%arg0: i32) -> (i32, i32) {
    %c0_i32 = arith.constant 0 : i32
    %c0_i32_0 = arith.constant 0 : i32
    return %arg0, %c0_i32 : i32, i32
  }
}

</mosaic_0001>

<llo_original>
// kernel: tpu_custom_call.1
$region0: #{tpu_custom_call.1}
  #allocation0 [shape = 'u32[]', space=smem, size = 0x4, offset = 0x4, fixed_abs, tag = 'smem constant byte address 0x4 - core index']
  #allocation1 [shape = 'u32[72,128]{1,0:T(1,128)}', space=vmem, size = 0x9000, scoped, tag = 'internal scratch']
  #allocation2 [shape = 'f32[1]{0:T(128)S(6)}', space=smem, size = 0x200, scoped, tag = 'scoped memory for tpu_custom_call.1']
  %s0 = inlined_call_operand.vmem [shape: f32[32], index: 0, kind: input, shape index: {}]
  %s1 = inlined_call_operand.vmem [shape: f32[32], index: 1, kind: input, shape index: {}]
  %s2 = inlined_call_operand.vmem [shape: f32[32], index: 2, kind: input, shape index: {}]
  %s3 = inlined_call_operand.<no memory space> [shape: f32[1], index: 3, kind: input, shape index: {}]
  %s4 = inlined_call_operand.hbm [shape: f32[8,128], index: 4, kind: input, shape index: {}]
  %s5 = inlined_call_operand.hbm [shape: f32[8,128], index: 5, kind: output, shape index: {}]
  %s6 = sld [smem:[#allocation0]]
  $region46: #{tpu_custom_call.1} parent=0
    _
  %s8 = ssub.s32 1, %s6
  %s9 = scalar_select 0, %s8, %s6
  %10 = sst [smem:[#allocation2]] %s3
  $region1: #{tpu_custom_call.1} parent=0
    #allocation3 [shape = 'u8[512]{0}', space=smem, size = 0x200, scoped, tag = 'input window, operand 0, single buffered']
    #allocation4 [shape = 's32[1]{0}', space=sflag, size = 0x4, scoped, tag = 'scoped memory for tpu_custom_call.1']
    #allocation5 [shape = 's32[1]{0}', space=sflag, size = 0x4, scoped, tag = 'scoped memory for tpu_custom_call.1']
    #allocation6 [shape = 's32[1]{0}', space=sflag, size = 0x4, scoped, tag = 'scoped memory for tpu_custom_call.1']
    #allocation7 [shape = 'u8[512]{0}', space=smem, size = 0x200, scoped, tag = 'input window, operand 1, single buffered']
    #allocation8 [shape = 's32[1]{0}', space=sflag, size = 0x4, scoped, tag = 'scoped memory for tpu_custom_call.1']
    #allocation9 [shape = 'u8[512]{0}', space=smem, size = 0x200, scoped, tag = 'input window, operand 2, single buffered']
    #allocation10 [shape = 'u8[4096]{0}', space=vmem, size = 0x1000, scoped, tag = 'input window, operand 4, single buffered']
    #allocation11 [shape = 'u8[4096]{0}', space=vmem, size = 0x1000, scoped, tag = 'output window, operand 0, single buffered']
    %11 = vsyncpa [#allocation6], 0
    %12 = vsyncpa [#allocation8], 0
    %13 = vsyncpa [#allocation4], 0
    %14 = vsyncpa [#allocation5], 0
    // Predicated region
    $region2: #{tpu_custom_call.1} parent=1 // pred_check
      _
    $region3: #{tpu_custom_call.1} parent=1 // pred_check_branch
      %16 = sbr.rel (0) target = $region5
    $region4: #{tpu_custom_call.1} parent=1 // pred_region
      %18 = vsyncadd [#allocation6], 0
      %s20 = sshll.u32 %s0, 4
      %s21 = int_to_ptr.vmem [resolvable:$true] %s20
      %23 = dma.vmem_to_smem %s21, 16, [#allocation3], [#allocation6]
    $region5: #{tpu_custom_call.1} parent=1 // pred_fallthru
      _
    // Predicated region
    $region6: #{tpu_custom_call.1} parent=1 // pred_check
      _
    $region7: #{tpu_custom_call.1} parent=1 // pred_check_branch
      %25 = sbr.rel (0) target = $region9
    $region8: #{tpu_custom_call.1} parent=1 // pred_region
      %27 = vsyncadd [#allocation8], 0
      %s29 = sshll.u32 %s1, 4
      %s30 = int_to_ptr.vmem [resolvable:$true] %s29
      %32 = dma.vmem_to_smem %s30, 16, [#allocation7], [#allocation8]
    $region9: #{tpu_custom_call.1} parent=1 // pred_fallthru
      _
    // Predicated region
    $region10: #{tpu_custom_call.1} parent=1 // pred_check
      _
    $region11: #{tpu_custom_call.1} parent=1 // pred_check_branch
      %34 = sbr.rel (0) target = $region13
    $region12: #{tpu_custom_call.1} parent=1 // pred_region
      %36 = vsyncadd [#allocation8], 0
      %s38 = sshll.u32 %s2, 4
      %s39 = int_to_ptr.vmem [resolvable:$true] %s38
      %41 = dma.vmem_to_smem %s39, 16, [#allocation9], [#allocation8]
    $region13: #{tpu_custom_call.1} parent=1 // pred_fallthru
      _
    // Predicated region
    $region14: #{tpu_custom_call.1} parent=1 // pred_check
      _
    $region15: #{tpu_custom_call.1} parent=1 // pred_check_branch
      %43 = sbr.rel (0) target = $region17
    $region16: #{tpu_custom_call.1} parent=1 // pred_region
      _
    $region17: #{tpu_custom_call.1} parent=1 // pred_fallthru
      _
    // Predicated region
    $region18: #{tpu_custom_call.1} parent=1 // pred_check
      _
    $region19: #{tpu_custom_call.1} parent=1 // pred_check_branch
      %45 = sbr.rel (0) target = $region21
    $region20: #{tpu_custom_call.1} parent=1 // pred_region
      %47 = vsyncadd [#allocation4], 0
      %s49 = sshll.u32 %s4, 4
      %s50 = int_to_ptr.hbm [resolvable:$true] %s49
      %s51 = sshll.u32 [#allocation10], 4
      %s52 = int_to_ptr.vmem [resolvable:$true] %s51
      %54 = dma.hbm_to_vmem [thread:$0]  %s50, 128, %s52, [#allocation4]
    $region21: #{tpu_custom_call.1} parent=1 // pred_fallthru
      _
    // Predicated region
    $region22: #{tpu_custom_call.1} parent=1 // pred_check
      _
    $region23: #{tpu_custom_call.1} parent=1 // pred_check_branch
      %56 = sbr.rel (0) target = $region25
    $region24: #{tpu_custom_call.1} parent=1 // pred_region
      %58 = dma.done [#allocation6], 16
    $region25: #{tpu_custom_call.1} parent=1 // pred_fallthru
      _
    // Predicated region
    $region26: #{tpu_custom_call.1} parent=1 // pred_check
      _
    $region27: #{tpu_custom_call.1} parent=1 // pred_check_branch
      %60 = sbr.rel (0) target = $region29
    $region28: #{tpu_custom_call.1} parent=1 // pred_region
      %62 = dma.done [#allocation8], 16
    $region29: #{tpu_custom_call.1} parent=1 // pred_fallthru
      _
    // Predicated region
    $region30: #{tpu_custom_call.1} parent=1 // pred_check
      _
    $region31: #{tpu_custom_call.1} parent=1 // pred_check_branch
      %64 = sbr.rel (0) target = $region33
    $region32: #{tpu_custom_call.1} parent=1 // pred_region
      %66 = dma.done [#allocation8], 16
    $region33: #{tpu_custom_call.1} parent=1 // pred_fallthru
      _
    // Predicated region
    $region34: #{tpu_custom_call.1} parent=1 // pred_check
      _
    $region35: #{tpu_custom_call.1} parent=1 // pred_check_branch
      %68 = sbr.rel (0) target = $region37
    $region36: #{tpu_custom_call.1} parent=1 // pred_region
      %70 = dma.done [#allocation4], 128
    $region37: #{tpu_custom_call.1} parent=1 // pred_fallthru
      _
    %71 = sfence
    %s72 = sld [smem:[#allocation2]]
    %v73 = vld [vmem:[#allocation10] sm:$0xff]
    %s74 = sld [smem:[#allocation3]]
    %v75 = vstv %s74
    %v76 = vmul.f32 %v73, %v75
    %s77 = sld [smem:[#allocation7]]
    %v78 = vstv %s77
    %v79 = vadd.f32 %v76, %v78
    %v80 = vmax.f32 %v79, 0.0
    %s81 = sld [smem:[#allocation9]]
    %v82 = vstv %s81
    %v83 = vmul.f32 %v80, %v82
    %v84 = vadd.f32 %v83, 0.0
    %s85 = sld [smem:[#allocation3 + $0x1]]
    %v86 = vstv %s85
    %v87 = vmul.f32 %v73, %v86
    %s88 = sld [smem:[#allocation7 + $0x1]]
    %v89 = vstv %s88
    %v90 = vadd.f32 %v87, %v89
    %v91 = vmax.f32 %v90, 0.0
    %s92 = sld [smem:[#allocation9 + $0x1]]
    %v93 = vstv %s92
    %v94 = vmul.f32 %v91, %v93
    %v95 = vadd.f32 %v84, %v94
    %s96 = sld [smem:[#allocation3 + $0x2]]
    %v97 = vstv %s96
    %v98 = vmul.f32 %v73, %v97
    %s99 = sld [smem:[#allocation7 + $0x2]]
    %v100 = vstv %s99
    %v101 = vadd.f32 %v98, %v100
    %v102 = vmax.f32 %v101, 0.0
    %s103 = sld [smem:[#allocation9 + $0x2]]
    %v104 = vstv %s103
    %v105 = vmul.f32 %v102, %v104
    %v106 = vadd.f32 %v95, %v105
    %s107 = sld [smem:[#allocation3 + $0x3]]
    %v108 = vstv %s107
    %v109 = vmul.f32 %v73, %v108
    %s110 = sld [smem:[#allocation7 + $0x3]]
    %v111 = vstv %s110
    %v112 = vadd.f32 %v109, %v111
    %v113 = vmax.f32 %v112, 0.0
    %s114 = sld [smem:[#allocation9 + $0x3]]
    %v115 = vstv %s114
    %v116 = vmul.f32 %v113, %v115
    %v117 = vadd.f32 %v106, %v116
    %s118 = sld [smem:[#allocation3 + $0x4]]
    %v119 = vstv %s118
    %v120 = vmul.f32 %v73, %v119
    %s121 = sld [smem:[#allocation7 + $0x4]]
    %v122 = vstv %s121
    %v123 = vadd.f32 %v120, %v122
    %v124 = vmax.f32 %v123, 0.0
    %s125 = sld [smem:[#allocation9 + $0x4]]
    %v126 = vstv %s125
    %v127 = vmul.f32 %v124, %v126
    %v128 = vadd.f32 %v117, %v127
    %s129 = sld [smem:[#allocation3 + $0x5]]
    %v130 = vstv %s129
    %v131 = vmul.f32 %v73, %v130
    %s132 = sld [smem:[#allocation7 + $0x5]]
    %v133 = vstv %s132
    %v134 = vadd.f32 %v131, %v133
    %v135 = vmax.f32 %v134, 0.0
    %s136 = sld [smem:[#allocation9 + $0x5]]
    %v137 = vstv %s136
    %v138 = vmul.f32 %v135, %v137
    %v139 = vadd.f32 %v128, %v138
    %s140 = sld [smem:[#allocation3 + $0x6]]
    %v141 = vstv %s140
    %v142 = vmul.f32 %v73, %v141
    %s143 = sld [smem:[#allocation7 + $0x6]]
    %v144 = vstv %s143
    %v145 = vadd.f32 %v142, %v144
    %v146 = vmax.f32 %v145, 0.0
    %s147 = sld [smem:[#allocation9 + $0x6]]
    %v148 = vstv %s147
    %v149 = vmul.f32 %v146, %v148
    %v150 = vadd.f32 %v139, %v149
    %s151 = sld [smem:[#allocation3 + $0x7]]
    %v152 = vstv %s151
    %v153 = vmul.f32 %v73, %v152
    %s154 = sld [smem:[#allocation7 + $0x7]]
    %v155 = vstv %s154
    %v156 = vadd.f32 %v153, %v155
    %v157 = vmax.f32 %v156, 0.0
    %s158 = sld [smem:[#allocation9 + $0x7]]
    %v159 = vstv %s158
    %v160 = vmul.f32 %v157, %v159
    %v161 = vadd.f32 %v150, %v160
    %s162 = sld [smem:[#allocation3 + $0x8]]
    %v163 = vstv %s162
    %v164 = vmul.f32 %v73, %v163
    %s165 = sld [smem:[#allocation7 + $0x8]]
    %v166 = vstv %s165
    %v167 = vadd.f32 %v164, %v166
    %v168 = vmax.f32 %v167, 0.0
    %s169 = sld [smem:[#allocation9 + $0x8]]
    %v170 = vstv %s169
    %v171 = vmul.f32 %v168, %v170
    %v172 = vadd.f32 %v161, %v171
    %s173 = sld [smem:[#allocation3 + $0x9]]
    %v174 = vstv %s173
    %v175 = vmul.f32 %v73, %v174
    %s176 = sld [smem:[#allocation7 + $0x9]]
    %v177 = vstv %s176
    %v178 = vadd.f32 %v175, %v177
    %v179 = vmax.f32 %v178, 0.0
    %s180 = sld [smem:[#allocation9 + $0x9]]
    %v181 = vstv %s180
    %v182 = vmul.f32 %v179, %v181
    %v183 = vadd.f32 %v172, %v182
    %s184 = sld [smem:[#allocation3 + $0xa]]
    %v185 = vstv %s184
    %v186 = vmul.f32 %v73, %v185
    %s187 = sld [smem:[#allocation7 + $0xa]]
    %v188 = vstv %s187
    %v189 = vadd.f32 %v186, %v188
    %v190 = vmax.f32 %v189, 0.0
    %s191 = sld [smem:[#allocation9 + $0xa]]
    %v192 = vstv %s191
    %v193 = vmul.f32 %v190, %v192
    %v194 = vadd.f32 %v183, %v193
    %s195 = sld [smem:[#allocation3 + $0xb]]
    %v196 = vstv %s195
    %v197 = vmul.f32 %v73, %v196
    %s198 = sld [smem:[#allocation7 + $0xb]]
    %v199 = vstv %s198
    %v200 = vadd.f32 %v197, %v199
    %v201 = vmax.f32 %v200, 0.0
    %s202 = sld [smem:[#allocation9 + $0xb]]
    %v203 = vstv %s202
    %v204 = vmul.f32 %v201, %v203
    %v205 = vadd.f32 %v194, %v204
    %s206 = sld [smem:[#allocation3 + $0xc]]
    %v207 = vstv %s206
    %v208 = vmul.f32 %v73, %v207
    %s209 = sld [smem:[#allocation7 + $0xc]]
    %v210 = vstv %s209
    %v211 = vadd.f32 %v208, %v210
    %v212 = vmax.f32 %v211, 0.0
    %s213 = sld [smem:[#allocation9 + $0xc]]
    %v214 = vstv %s213
    %v215 = vmul.f32 %v212, %v214
    %v216 = vadd.f32 %v205, %v215
    %s217 = sld [smem:[#allocation3 + $0xd]]
    %v218 = vstv %s217
    %v219 = vmul.f32 %v73, %v218
    %s220 = sld [smem:[#allocation7 + $0xd]]
    %v221 = vstv %s220
    %v222 = vadd.f32 %v219, %v221
    %v223 = vmax.f32 %v222, 0.0
    %s224 = sld [smem:[#allocation9 + $0xd]]
    %v225 = vstv %s224
    %v226 = vmul.f32 %v223, %v225
    %v227 = vadd.f32 %v216, %v226
    %s228 = sld [smem:[#allocation3 + $0xe]]
    %v229 = vstv %s228
    %v230 = vmul.f32 %v73, %v229
    %s231 = sld [smem:[#allocation7 + $0xe]]
    %v232 = vstv %s231
    %v233 = vadd.f32 %v230, %v232
    %v234 = vmax.f32 %v233, 0.0
    %s235 = sld [smem:[#allocation9 + $0xe]]
    %v236 = vstv %s235
    %v237 = vmul.f32 %v234, %v236
    %v238 = vadd.f32 %v227, %v237
    %s239 = sld [smem:[#allocation3 + $0xf]]
    %v240 = vstv %s239
    %v241 = vmul.f32 %v73, %v240
    %s242 = sld [smem:[#allocation7 + $0xf]]
    %v243 = vstv %s242
    %v244 = vadd.f32 %v241, %v243
    %v245 = vmax.f32 %v244, 0.0
    %s246 = sld [smem:[#allocation9 + $0xf]]
    %v247 = vstv %s246
    %v248 = vmul.f32 %v245, %v247
    %v249 = vadd.f32 %v238, %v248
    %s250 = sld [smem:[#allocation3 + $0x10]]
    %v251 = vstv %s250
    %v252 = vmul.f32 %v73, %v251
    %s253 = sld [smem:[#allocation7 + $0x10]]
    %v254 = vstv %s253
    %v255 = vadd.f32 %v252, %v254
    %v256 = vmax.f32 %v255, 0.0
    %s257 = sld [smem:[#allocation9 + $0x10]]
    %v258 = vstv %s257
    %v259 = vmul.f32 %v256, %v258
    %v260 = vadd.f32 %v249, %v259
    %s261 = sld [smem:[#allocation3 + $0x11]]
    %v262 = vstv %s261
    %v263 = vmul.f32 %v73, %v262
    %s264 = sld [smem:[#allocation7 + $0x11]]
    %v265 = vstv %s264
    %v266 = vadd.f32 %v263, %v265
    %v267 = vmax.f32 %v266, 0.0
    %s268 = sld [smem:[#allocation9 + $0x11]]
    %v269 = vstv %s268
    %v270 = vmul.f32 %v267, %v269
    %v271 = vadd.f32 %v260, %v270
    %s272 = sld [smem:[#allocation3 + $0x12]]
    %v273 = vstv %s272
    %v274 = vmul.f32 %v73, %v273
    %s275 = sld [smem:[#allocation7 + $0x12]]
    %v276 = vstv %s275
    %v277 = vadd.f32 %v274, %v276
    %v278 = vmax.f32 %v277, 0.0
    %s279 = sld [smem:[#allocation9 + $0x12]]
    %v280 = vstv %s279
    %v281 = vmul.f32 %v278, %v280
    %v282 = vadd.f32 %v271, %v281
    %s283 = sld [smem:[#allocation3 + $0x13]]
    %v284 = vstv %s283
    %v285 = vmul.f32 %v73, %v284
    %s286 = sld [smem:[#allocation7 + $0x13]]
    %v287 = vstv %s286
    %v288 = vadd.f32 %v285, %v287
    %v289 = vmax.f32 %v288, 0.0
    %s290 = sld [smem:[#allocation9 + $0x13]]
    %v291 = vstv %s290
    %v292 = vmul.f32 %v289, %v291
    %v293 = vadd.f32 %v282, %v292
    %s294 = sld [smem:[#allocation3 + $0x14]]
    %v295 = vstv %s294
    %v296 = vmul.f32 %v73, %v295
    %s297 = sld [smem:[#allocation7 + $0x14]]
    %v298 = vstv %s297
    %v299 = vadd.f32 %v296, %v298
    %v300 = vmax.f32 %v299, 0.0
    %s301 = sld [smem:[#allocation9 + $0x14]]
    %v302 = vstv %s301
    %v303 = vmul.f32 %v300, %v302
    %v304 = vadd.f32 %v293, %v303
    %s305 = sld [smem:[#allocation3 + $0x15]]
    %v306 = vstv %s305
    %v307 = vmul.f32 %v73, %v306
    %s308 = sld [smem:[#allocation7 + $0x15]]
    %v309 = vstv %s308
    %v310 = vadd.f32 %v307, %v309
    %v311 = vmax.f32 %v310, 0.0
    %s312 = sld [smem:[#allocation9 + $0x15]]
    %v313 = vstv %s312
    %v314 = vmul.f32 %v311, %v313
    %v315 = vadd.f32 %v304, %v314
    %s316 = sld [smem:[#allocation3 + $0x16]]
    %v317 = vstv %s316
    %v318 = vmul.f32 %v73, %v317
    %s319 = sld [smem:[#allocation7 + $0x16]]
    %v320 = vstv %s319
    %v321 = vadd.f32 %v318, %v320
    %v322 = vmax.f32 %v321, 0.0
    %s323 = sld [smem:[#allocation9 + $0x16]]
    %v324 = vstv %s323
    %v325 = vmul.f32 %v322, %v324
    %v326 = vadd.f32 %v315, %v325
    %s327 = sld [smem:[#allocation3 + $0x17]]
    %v328 = vstv %s327
    %v329 = vmul.f32 %v73, %v328
    %s330 = sld [smem:[#allocation7 + $0x17]]
    %v331 = vstv %s330
    %v332 = vadd.f32 %v329, %v331
    %v333 = vmax.f32 %v332, 0.0
    %s334 = sld [smem:[#allocation9 + $0x17]]
    %v335 = vstv %s334
    %v336 = vmul.f32 %v333, %v335
    %v337 = vadd.f32 %v326, %v336
    %s338 = sld [smem:[#allocation3 + $0x18]]
    %v339 = vstv %s338
    %v340 = vmul.f32 %v73, %v339
    %s341 = sld [smem:[#allocation7 + $0x18]]
    %v342 = vstv %s341
    %v343 = vadd.f32 %v340, %v342
    %v344 = vmax.f32 %v343, 0.0
    %s345 = sld [smem:[#allocation9 + $0x18]]
    %v346 = vstv %s345
    %v347 = vmul.f32 %v344, %v346
    %v348 = vadd.f32 %v337, %v347
    %s349 = sld [smem:[#allocation3 + $0x19]]
    %v350 = vstv %s349
    %v351 = vmul.f32 %v73, %v350
    %s352 = sld [smem:[#allocation7 + $0x19]]
    %v353 = vstv %s352
    %v354 = vadd.f32 %v351, %v353
    %v355 = vmax.f32 %v354, 0.0
    %s356 = sld [smem:[#allocation9 + $0x19]]
    %v357 = vstv %s356
    %v358 = vmul.f32 %v355, %v357
    %v359 = vadd.f32 %v348, %v358
    %s360 = sld [smem:[#allocation3 + $0x1a]]
    %v361 = vstv %s360
    %v362 = vmul.f32 %v73, %v361
    %s363 = sld [smem:[#allocation7 + $0x1a]]
    %v364 = vstv %s363
    %v365 = vadd.f32 %v362, %v364
    %v366 = vmax.f32 %v365, 0.0
    %s367 = sld [smem:[#allocation9 + $0x1a]]
    %v368 = vstv %s367
    %v369 = vmul.f32 %v366, %v368
    %v370 = vadd.f32 %v359, %v369
    %s371 = sld [smem:[#allocation3 + $0x1b]]
    %v372 = vstv %s371
    %v373 = vmul.f32 %v73, %v372
    %s374 = sld [smem:[#allocation7 + $0x1b]]
    %v375 = vstv %s374
    %v376 = vadd.f32 %v373, %v375
    %v377 = vmax.f32 %v376, 0.0
    %s378 = sld [smem:[#allocation9 + $0x1b]]
    %v379 = vstv %s378
    %v380 = vmul.f32 %v377, %v379
    %v381 = vadd.f32 %v370, %v380
    %s382 = sld [smem:[#allocation3 + $0x1c]]
    %v383 = vstv %s382
    %v384 = vmul.f32 %v73, %v383
    %s385 = sld [smem:[#allocation7 + $0x1c]]
    %v386 = vstv %s385
    %v387 = vadd.f32 %v384, %v386
    %v388 = vmax.f32 %v387, 0.0
    %s389 = sld [smem:[#allocation9 + $0x1c]]
    %v390 = vstv %s389
    %v391 = vmul.f32 %v388, %v390
    %v392 = vadd.f32 %v381, %v391
    %s393 = sld [smem:[#allocation3 + $0x1d]]
    %v394 = vstv %s393
    %v395 = vmul.f32 %v73, %v394
    %s396 = sld [smem:[#allocation7 + $0x1d]]
    %v397 = vstv %s396
    %v398 = vadd.f32 %v395, %v397
    %v399 = vmax.f32 %v398, 0.0
    %s400 = sld [smem:[#allocation9 + $0x1d]]
    %v401 = vstv %s400
    %v402 = vmul.f32 %v399, %v401
    %v403 = vadd.f32 %v392, %v402
    %s404 = sld [smem:[#allocation3 + $0x1e]]
    %v405 = vstv %s404
    %v406 = vmul.f32 %v73, %v405
    %s407 = sld [smem:[#allocation7 + $0x1e]]
    %v408 = vstv %s407
    %v409 = vadd.f32 %v406, %v408
    %v410 = vmax.f32 %v409, 0.0
    %s411 = sld [smem:[#allocation9 + $0x1e]]
    %v412 = vstv %s411
    %v413 = vmul.f32 %v410, %v412
    %v414 = vadd.f32 %v403, %v413
    %s415 = sld [smem:[#allocation3 + $0x1f]]
    %v416 = vstv %s415
    %v417 = vmul.f32 %v73, %v416
    %s418 = sld [smem:[#allocation7 + $0x1f]]
    %v419 = vstv %s418
    %v420 = vadd.f32 %v417, %v419
    %v421 = vmax.f32 %v420, 0.0
    %s422 = sld [smem:[#allocation9 + $0x1f]]
    %v423 = vstv %s422
    %v424 = vmul.f32 %v421, %v423
    %v425 = vadd.f32 %v414, %v424
    %v426 = vstv %s72
    %v427 = vadd.f32 %v425, %v426
    %428 = vst [vmem:[#allocation11] sm:$0xff] %v427
    // Predicated region
    $region38: #{tpu_custom_call.1} parent=1 // pred_check
      _
    $region39: #{tpu_custom_call.1} parent=1 // pred_check_branch
      %430 = sbr.rel (0) target = $region41
    $region40: #{tpu_custom_call.1} parent=1 // pred_region
      %432 = vsyncadd [#allocation5], 0
      %s434 = sshll.u32 [#allocation11], 4
      %s435 = int_to_ptr.vmem [resolvable:$true] %s434
      %s436 = sshll.u32 %s5, 4
      %s437 = int_to_ptr.hbm [resolvable:$true] %s436
      %439 = dma.vmem_to_hbm [thread:$0]  %s435, 128, %s437, [#allocation5]
    $region41: #{tpu_custom_call.1} parent=1 // pred_fallthru
      _
    // Predicated region
    $region42: #{tpu_custom_call.1} parent=1 // pred_check
      _
    $region43: #{tpu_custom_call.1} parent=1 // pred_check_branch
      %441 = sbr.rel (0) target = $region45
    $region44: #{tpu_custom_call.1} parent=1 // pred_region
      %443 = dma.done [#allocation5], 128
    $region45: #{tpu_custom_call.1} parent=1 // pred_fallthru
      _
    %444 = vsyncpa [#allocation4], 1
    %445 = vsyncpa [#allocation5], 1
    %446 = vsyncpa [#allocation6], 1
    %447 = vsyncpa [#allocation8], 1

</llo_original>
